<compile_context>
chip_gen: v6e
topology: v6e:2x2x1
jax: 0.10.0
libtpu: 0.0.40
codegen_flags: <defaults>
</compile_context>

<pallas_src>
import functools

import jax
import jax.numpy as jnp
from jax import lax
from jax.experimental import pallas as pl
from jax.experimental.pallas import tpu as pltpu

EPS = 1e-5                 # PyTorch nn.LayerNorm default
_FUSED_FOUT_LIMIT = 512    # max Wh*2*dim output lanes for the fused (kron) mode


def _round_up(a, b):
    return (a + b - 1) // b * b


def _cdiv(a, b):
    return (a + b - 1) // b


def _vmem_budget():
    """Per-chip VMEM working-set budget for the row tile (bytes)."""
    cap = 128 << 20
    try:
        cap = int(getattr(pltpu.get_tpu_info(), "vmem_capacity_bytes", cap))
    except Exception:
        pass
    # ~1/4 of physical VMEM, capped at 24 MiB: 24 MiB on 128-MiB parts
    # (v5e/v6e), 16 MiB on 64-MiB/TC parts (v7x). Leaves headroom for Mosaic.
    return max(4 << 20, min(24 << 20, cap // 4))


def _ds_kernel(x_ref, wbig_ref, sseg_ref, wmean_ref, eout_ref, bias_ref, o_ref, *, inv_n):
    """LayerNorm(4C) + bias-free Linear(4C->2C) over G independent segments/row.

    x_ref:     (t, Fin)    Fin = G*4C features; segment layout is encoded in the
                           constant matrices (built in the wrapper).
    wbig_ref:  (Fin, Fout) block-diagonal gamma-scaled reduction weight (x.dtype).
    sseg_ref:  (Fin, G)    0/1 per-segment row-sum matrix (f32).
    wmean_ref: (G, Fout)   per-segment column sums of (gamma .* W^T) (f32).
    eout_ref:  (G, Fout)   0/1 broadcast of a per-segment scalar to outputs (f32).
    bias_ref:  (1, Fout)   beta @ W^T, tiled per segment (f32).
    o_ref:     (t, Fout)   Fout = G*2C, lane-dense packed outputs.
    """
    x = x_ref[...]                        # native dtype (bf16 stays bf16 for the MXU)
    xf = x.astype(jnp.float32)            # stats path kept in f32
    # Per-segment mean and one-pass variance via 0/1 MXU reductions.
    mean = jnp.dot(xf, sseg_ref[...], preferred_element_type=jnp.float32) * inv_n        # (t, G)
    sq = jnp.dot(xf * xf, sseg_ref[...], preferred_element_type=jnp.float32) * inv_n     # (t, G)
    inv = lax.rsqrt(sq - mean * mean + EPS)                                               # (t, G)
    # Folded affine + reduction:
    #   y = inv * (x @ (gamma .* W^T) - mean @ Wmean) + beta @ W^T
    main = jnp.dot(x, wbig_ref[...], preferred_element_type=jnp.float32)                  # (t, Fout)
    main = main - jnp.dot(mean, wmean_ref[...], preferred_element_type=jnp.float32)
    scale = jnp.dot(inv, eout_ref[...], preferred_element_type=jnp.float32)               # (t, Fout)
    o_ref[...] = (scale * main + bias_ref[...]).astype(o_ref.dtype)


def _const_spec(shape):
    """Grid-invariant constant input: fetched once, single-buffered."""
    idx = lambda i, _shape=shape: (0,) * len(_shape)
    try:
        return pl.BlockSpec(shape, idx, pipeline_mode=pl.Buffered(1))
    except Exception:  # older Pallas without pipeline_mode/Buffered(1)
        return pl.BlockSpec(shape, idx)


def _run_tiled(rows, wbig, sseg, wmean, eout, bias, *, c4, tm, out_dtype):
    """Tile `rows` (N, Fin) along the row axis and run the fused kernel."""
    n_rows, fin = rows.shape
    fout = wbig.shape[1]
    g = sseg.shape[1]
    in_itemsize = rows.dtype.itemsize
    out_itemsize = jnp.dtype(out_dtype).itemsize

    const_bytes = int(wbig.size) * wbig.dtype.itemsize + 4 * int(
        sseg.size + wmean.size + eout.size + bias.size)

    # Row granularity: 8 sublanes for 32-bit, 16 for bf16 (sublane packing).
    unit = max(8, 32 // in_itemsize)
    # Per-row VMEM: double-buffered in/out blocks + f32 intermediates
    # (xf, xf*xf ~ 2*Fin; main, scale, pre-cast output ~ 4*Fout).
    row_bytes = 2 * fin * in_itemsize + 2 * fout * out_itemsize + 4 * (2 * fin + 4 * fout)
    budget = _vmem_budget()
    t_cap = max(unit, (max(0, budget - const_bytes) // row_bytes) // unit * unit)

    t = min(max(unit, (tm // unit) * unit), t_cap)
    if n_rows >= 2 * unit:
        # Keep >= 2 grid steps so megacore / both v7x TensorCores can split rows.
        # (Explicit pltpu.CORE_PARALLEL could be used on v7x if one TC sits idle.)
        t = min(t, _round_up(_cdiv(n_rows, 2), unit))
    if t >= n_rows:
        t = n_rows                 # one full-array block; always a legal block shape

    grid = (_cdiv(n_rows, t),)     # no table padding: Pallas clips the last block

    cost = pl.CostEstimate(
        flops=2 * n_rows * (fin * fout + 2 * fin * g + 2 * g * fout) + 8 * n_rows * fout,
        transcendentals=n_rows * g,
        bytes_accessed=n_rows * (fin * in_itemsize + fout * out_itemsize) + const_bytes,
    )

    return pl.pallas_call(
        functools.partial(_ds_kernel, inv_n=1.0 / c4),
        out_shape=jax.ShapeDtypeStruct((n_rows, fout), out_dtype),
        grid_spec=pltpu.PrefetchScalarGridSpec(
            num_scalar_prefetch=0,
            grid=grid,
            in_specs=[
                pl.BlockSpec((t, fin), lambda i: (i, 0)),
                _const_spec((fin, fout)),
                _const_spec((fin, g)),
                _const_spec((g, fout)),
                _const_spec((g, fout)),
                _const_spec((1, fout)),
            ],
            out_specs=pl.BlockSpec((t, fout), lambda i: (i, 0)),
        ),
        compiler_params=pltpu.CompilerParams(
            dimension_semantics=("parallel",),
            vmem_limit_bytes=int(min(64 << 20, max(32 << 20, 2 * budget))),
        ),
        cost_estimate=cost,
    )(rows, wbig, sseg, wmean, eout, bias)


def _fused_constants(gamma, beta, w_reduction, wh, mxu_dtype):
    """Constants for fused mode: input-row feature layout is (dh, wh, dw, c)."""
    c2, c4 = w_reduction.shape                      # (2*dim, 4*dim)
    w_t = w_reduction.astype(jnp.float32).T         # (4C, 2C)
    wg = gamma.astype(jnp.float32)[:, None] * w_t   # gamma folded into the weight
    half = c4 // 2                                  # 2C (one (dw, c) chunk)
    eye = jnp.eye(wh, dtype=jnp.float32)
    wbig = jnp.concatenate(
        [jnp.kron(eye, wg[:half, :]), jnp.kron(eye, wg[half:, :])], axis=0)   # (2*Wh*2C, Wh*2C)
    seg = jnp.kron(eye, jnp.ones((half, 1), jnp.float32))
    sseg = jnp.concatenate([seg, seg], axis=0)                                 # (Fin, Wh)
    colsum = jnp.sum(wg, axis=0)                                               # (2C,)
    wmean = jnp.kron(eye, colsum[None, :])                                     # (Wh, Fout)
    eout = jnp.kron(eye, jnp.ones((1, c2), jnp.float32))                       # (Wh, Fout)
    bias = jnp.tile(beta.astype(jnp.float32) @ w_t, (wh,))[None, :]            # (1, Fout)
    return wbig.astype(mxu_dtype), sseg, wmean, eout, bias


def _merged_constants(gamma, beta, w_reduction, k, mxu_dtype):
    """Constants for the merged fallback: k contiguous 4C tokens per input row."""
    c2, c4 = w_reduction.shape
    w_t = w_reduction.astype(jnp.float32).T
    wg = gamma.astype(jnp.float32)[:, None] * w_t
    eye = jnp.eye(k, dtype=jnp.float32)
    wbig = jnp.kron(eye, wg)                                   # (k*4C, k*2C)
    sseg = jnp.kron(eye, jnp.ones((c4, 1), jnp.float32))       # (k*4C, k)
    colsum = jnp.sum(wg, axis=0)
    wmean = jnp.kron(eye, colsum[None, :])                     # (k, k*2C)
    eout = jnp.kron(eye, jnp.ones((1, c2), jnp.float32))       # (k, k*2C)
    bias = jnp.tile(beta.astype(jnp.float32) @ w_t, (k,))[None, :]
    return wbig.astype(mxu_dtype), sseg, wmean, eout, bias


def _pick_pack(wh, c2):
    """Pick k | Wh tokens per packed row: prefer lane-dense (k*C2 % 128 == 0),
    then >=256 output lanes, then the SMALLEST k (least kron MXU inflation)."""
    best, best_key = 1, None
    for k in range(1, wh + 1):
        if wh % k:
            continue
        fout = k * c2
        if fout > 512 and k > 1:
            continue
        key = (fout % 128 == 0, fout >= 256, -k)
        if best_key is None or key > best_key:
            best, best_key = k, key
    return best


def down_sample(x, gamma, beta, w_reduction, *, input_shape, dim, tm=2048, mode=None):
    """Pallas implementation of DownSample.forward.

    Args:
      x:            (B, Z*H*W, dim)
      gamma, beta:  (4*dim,) LayerNorm affine params.
      w_reduction:  (2*dim, 4*dim) bias-free nn.Linear weight.
      input_shape:  (Z, H, W).
      dim:          input channel count.
      tm:           requested row tile (rows of the packed table per grid step).
      mode:         None (auto) | "fused" | "merged".
    Returns:
      (B, Z * H//2 * W//2, 2*dim), same dtype as x.
    """
    Z, H, W = input_shape
    B, L, C = x.shape
    assert L == Z * H * W and C == dim
    assert H % 2 == 0 and W % 2 == 0
    Hh, Wh = H // 2, W // 2
    C4, C2 = 4 * dim, 2 * dim
    L2 = Z * Hh * Wh

    mxu_dtype = jnp.bfloat16 if x.dtype == jnp.bfloat16 else jnp.float32

    if mode is None:
        # Gate fused mode on the MXU inflation of the dense kron weight
        # (output lane count Wh*2*dim), not just its byte size.
        mode = "fused" if Wh * C2 <= _FUSED_FOUT_LIMIT else "merged"

    if mode == "fused":
        # Zero-copy view: rows = (b, z, hh) H-row pairs; features = (dh, wh, dw, c).
        # No XLA transpose / extra HBM round trip before the kernel.
        rows = x.reshape(B * Z * Hh, 2 * W * C)
        consts = _fused_constants(gamma, beta, w_reduction, Wh, mxu_dtype)
    else:
        # General fallback: build the merged (M, 4C) table with XLA (one extra
        # HBM round trip), then pack k | Wh merged tokens per kernel row so
        # stores stay lane-dense without padding the row count.
        xm = x.reshape(B, Z, Hh, 2, Wh, 2, C)
        xm = jnp.transpose(xm, (0, 1, 2, 4, 3, 5, 6)).reshape(B * L2, C4)
        k = _pick_pack(Wh, C2)
        rows = xm.reshape((B * L2) // k, k * C4)
        consts = _merged_constants(gamma, beta, w_reduction, k, mxu_dtype)

    out = _run_tiled(rows, *consts, c4=C4, tm=tm, out_dtype=x.dtype)
    # Row-major layout of the packed output is identical to (B, L2, 2*dim).
    return out.reshape(B, L2, C2)


def _reference(x, gamma, beta, w_reduction, *, input_shape, dim):
    Z, H, W = input_shape
    B, L, C = x.shape
    xm = x.reshape(B, Z, H, W, C)
    xm = xm.reshape(B, Z, H // 2, 2, W // 2, 2, C)
    xm = jnp.transpose(xm, (0, 1, 2, 4, 3, 5, 6)).reshape(B, -1, 4 * C)
    xm = xm.astype(jnp.float32)
    mean = jnp.mean(xm, axis=-1, keepdims=True)
    var = jnp.mean((xm - mean) ** 2, axis=-1, keepdims=True)
    y = (xm - mean) * lax.rsqrt(var + EPS) * gamma + beta
    return jnp.einsum("blk,ok->blo", y, w_reduction.astype(jnp.float32),
                      precision=jax.lax.Precision.HIGHEST)


if __name__ == "__main__":
    # Small shapes consistent with the module: Z=2, H=8, W=8, dim=32, batch=2.
    B, Z, H, W, dim = 2, 2, 8, 8, 32
    key = jax.random.PRNGKey(0)
    kx, kw, kg, kb = jax.random.split(key, 4)

    x = jax.random.normal(kx, (B, Z * H * W, dim), dtype=jnp.float32)
    gamma = 1.0 + 0.1 * jax.random.normal(kg, (4 * dim,), dtype=jnp.float32)
    beta = 0.1 * jax.random.normal(kb, (4 * dim,), dtype=jnp.float32)
    w_reduction = 0.02 * jax.random.normal(kw, (2 * dim, 4 * dim), dtype=jnp.float32)

    ref = _reference(x, gamma, beta, w_reduction, input_shape=(Z, H, W), dim=dim)

    # Default (fused, no-XLA-transpose) path, f32.
    out = down_sample(x, gamma, beta, w_reduction, input_shape=(Z, H, W), dim=dim)
    out = jax.block_until_ready(out)
    assert out.shape == (B, Z * (H // 2) * (W // 2), 2 * dim)
    assert jnp.allclose(out, ref.astype(out.dtype), atol=5e-4, rtol=5e-4)

    # General fallback path (XLA merge + lane-dense k-token packing), f32.
    out_m = down_sample(x, gamma, beta, w_reduction, input_shape=(Z, H, W),
                        dim=dim, mode="merged")
    out_m = jax.block_until_ready(out_m)
    assert jnp.allclose(out_m, ref.astype(out_m.dtype), atol=5e-4, rtol=5e-4)

    # bf16 input: bf16 operands into the MXU, f32 stats/accumulation.
    xb = x.astype(jnp.bfloat16)
    ref_b = _reference(xb, gamma, beta, w_reduction, input_shape=(Z, H, W), dim=dim)
    out_b = down_sample(xb, gamma, beta, w_reduction, input_shape=(Z, H, W), dim=dim)
    out_b = jax.block_until_ready(out_b)
    assert out_b.dtype == jnp.bfloat16
    assert jnp.allclose(out_b.astype(jnp.float32), ref_b, atol=3e-2, rtol=3e-2)

    print("KERNEL_OK")
</pallas_src>

<mosaic_0001>
module attributes {stable_mosaic.version = 11 : i64} {
  func.func @_ds_kernel(%arg0: i32, %arg1: memref<8x512xf32, #tpu.memory_space<vmem>>, %arg2: memref<512x256xf32, #tpu.memory_space<vmem>>, %arg3: memref<512x4xf32, #tpu.memory_space<vmem>>, %arg4: memref<4x256xf32, #tpu.memory_space<vmem>>, %arg5: memref<4x256xf32, #tpu.memory_space<vmem>>, %arg6: memref<1x256xf32, #tpu.memory_space<vmem>>, %arg7: memref<8x256xf32, #tpu.memory_space<vmem>>) attributes {dimension_semantics = [#tpu.dimension_semantics<parallel>], iteration_bounds = array<i64: 2>, scalar_prefetch = 0 : i64, scratch_operands = 0 : i64, tpu.core_type = #tpu.core_type<tc>, window_params = [{transform_indices = @transform_0, window_bounds = array<i64: 8, 512>}, {pipeline_mode = #tpu.pipeline_mode<synchronous>, transform_indices = @transform_1, window_bounds = array<i64: 512, 256>}, {pipeline_mode = #tpu.pipeline_mode<synchronous>, transform_indices = @transform_2, window_bounds = array<i64: 512, 4>}, {pipeline_mode = #tpu.pipeline_mode<synchronous>, transform_indices = @transform_3, window_bounds = array<i64: 4, 256>}, {pipeline_mode = #tpu.pipeline_mode<synchronous>, transform_indices = @transform_4, window_bounds = array<i64: 4, 256>}, {pipeline_mode = #tpu.pipeline_mode<synchronous>, transform_indices = @transform_5, window_bounds = array<i64: 1, 256>}, {transform_indices = @transform_6, window_bounds = array<i64: 8, 256>}]} {
    %c0 = arith.constant 0 : index
    %c0_0 = arith.constant 0 : index
    %0 = vector.load %arg1[%c0, %c0_0] : memref<8x512xf32, #tpu.memory_space<vmem>>, vector<8x512xf32>
    %c0_1 = arith.constant 0 : index
    %c0_2 = arith.constant 0 : index
    %1 = vector.load %arg3[%c0_1, %c0_2] : memref<512x4xf32, #tpu.memory_space<vmem>>, vector<512x4xf32>
    %cst = arith.constant dense<0.000000e+00> : vector<8x4xf32>
    %2 = tpu.matmul %0, %1, %cst {dimension_numbers = #tpu.dot_dimension_numbers<[1], [0], [0], [1], [0, 0, 1, 1], [], []>} : vector<8x512xf32>, vector<512x4xf32>, vector<8x4xf32> -> vector<8x4xf32>
    %cst_3 = arith.constant 7.812500e-03 : f32
    %3 = vector.broadcast %cst_3 : f32 to vector<8x4xf32>
    %4 = arith.mulf %2, %3 : vector<8x4xf32>
    %5 = arith.mulf %0, %0 : vector<8x512xf32>
    %c0_4 = arith.constant 0 : index
    %c0_5 = arith.constant 0 : index
    %6 = vector.load %arg3[%c0_4, %c0_5] : memref<512x4xf32, #tpu.memory_space<vmem>>, vector<512x4xf32>
    %cst_6 = arith.constant dense<0.000000e+00> : vector<8x4xf32>
    %7 = tpu.matmul %5, %6, %cst_6 {dimension_numbers = #tpu.dot_dimension_numbers<[1], [0], [0], [1], [0, 0, 1, 1], [], []>} : vector<8x512xf32>, vector<512x4xf32>, vector<8x4xf32> -> vector<8x4xf32>
    %cst_7 = arith.constant 7.812500e-03 : f32
    %8 = vector.broadcast %cst_7 : f32 to vector<8x4xf32>
    %9 = arith.mulf %7, %8 : vector<8x4xf32>
    %10 = arith.mulf %4, %4 : vector<8x4xf32>
    %11 = arith.subf %9, %10 : vector<8x4xf32>
    %cst_8 = arith.constant 9.99999974E-6 : f32
    %12 = vector.broadcast %cst_8 : f32 to vector<8x4xf32>
    %13 = arith.addf %11, %12 : vector<8x4xf32>
    %14 = math.rsqrt %13 : vector<8x4xf32>
    %c0_9 = arith.constant 0 : index
    %c0_10 = arith.constant 0 : index
    %15 = vector.load %arg2[%c0_9, %c0_10] : memref<512x256xf32, #tpu.memory_space<vmem>>, vector<512x256xf32>
    %cst_11 = arith.constant dense<0.000000e+00> : vector<8x256xf32>
    %16 = tpu.matmul %0, %15, %cst_11 {dimension_numbers = #tpu.dot_dimension_numbers<[1], [0], [0], [1], [0, 0, 1, 1], [], []>} : vector<8x512xf32>, vector<512x256xf32>, vector<8x256xf32> -> vector<8x256xf32>
    %c0_12 = arith.constant 0 : index
    %c0_13 = arith.constant 0 : index
    %17 = vector.load %arg4[%c0_12, %c0_13] : memref<4x256xf32, #tpu.memory_space<vmem>>, vector<4x256xf32>
    %cst_14 = arith.constant dense<0.000000e+00> : vector<8x256xf32>
    %18 = tpu.matmul %4, %17, %cst_14 {dimension_numbers = #tpu.dot_dimension_numbers<[1], [0], [0], [1], [0, 0, 1, 1], [], []>} : vector<8x4xf32>, vector<4x256xf32>, vector<8x256xf32> -> vector<8x256xf32>
    %19 = arith.subf %16, %18 : vector<8x256xf32>
    %c0_15 = arith.constant 0 : index
    %c0_16 = arith.constant 0 : index
    %20 = vector.load %arg5[%c0_15, %c0_16] : memref<4x256xf32, #tpu.memory_space<vmem>>, vector<4x256xf32>
    %cst_17 = arith.constant dense<0.000000e+00> : vector<8x256xf32>
    %21 = tpu.matmul %14, %20, %cst_17 {dimension_numbers = #tpu.dot_dimension_numbers<[1], [0], [0], [1], [0, 0, 1, 1], [], []>} : vector<8x4xf32>, vector<4x256xf32>, vector<8x256xf32> -> vector<8x256xf32>
    %22 = arith.mulf %21, %19 : vector<8x256xf32>
    %c0_18 = arith.constant 0 : index
    %c0_19 = arith.constant 0 : index
    %23 = vector.load %arg6[%c0_18, %c0_19] : memref<1x256xf32, #tpu.memory_space<vmem>>, vector<1x256xf32>
    %24 = vector.broadcast %23 : vector<1x256xf32> to vector<8x256xf32>
    %25 = arith.addf %22, %24 : vector<8x256xf32>
    %c0_20 = arith.constant 0 : index
    %c0_21 = arith.constant 0 : index
    %26 = vector.load %arg7[%c0_20, %c0_21] : memref<8x256xf32, #tpu.memory_space<vmem>>, vector<8x256xf32>
    tpu.vector_store %arg7[%c0_20, %c0_21], %25 {strides = array<i32>} : memref<8x256xf32, #tpu.memory_space<vmem>>, vector<8x256xf32>,
    return
  }
  func.func @transform_0(%arg0: i32) -> (i32, i32) {
    %c0_i32 = arith.constant 0 : i32
    %c0_i32_0 = arith.constant 0 : i32
    return %arg0, %c0_i32 : i32, i32
  }
  func.func @transform_1(%arg0: i32) -> (i32, i32) {
    %c0_i32 = arith.constant 0 : i32
    %c0_i32_0 = arith.constant 0 : i32
    %c0_i32_1 = arith.constant 0 : i32
    return %c0_i32, %c0_i32_0 : i32, i32
  }
  func.func @transform_2(%arg0: i32) -> (i32, i32) {
    %c0_i32 = arith.constant 0 : i32
    %c0_i32_0 = arith.constant 0 : i32
    %c0_i32_1 = arith.constant 0 : i32
    return %c0_i32, %c0_i32_0 : i32, i32
  }
  func.func @transform_3(%arg0: i32) -> (i32, i32) {
    %c0_i32 = arith.constant 0 : i32
    %c0_i32_0 = arith.constant 0 : i32
    %c0_i32_1 = arith.constant 0 : i32
    return %c0_i32, %c0_i32_0 : i32, i32
  }
  func.func @transform_4(%arg0: i32) -> (i32, i32) {
    %c0_i32 = arith.constant 0 : i32
    %c0_i32_0 = arith.constant 0 : i32
    %c0_i32_1 = arith.constant 0 : i32
    return %c0_i32, %c0_i32_0 : i32, i32
  }
  func.func @transform_5(%arg0: i32) -> (i32, i32) {
    %c0_i32 = arith.constant 0 : i32
    %c0_i32_0 = arith.constant 0 : i32
    %c0_i32_1 = arith.constant 0 : i32
    return %c0_i32, %c0_i32_0 : i32, i32
  }
  func.func @transform_6(%arg0: i32) -> (i32, i32) {
    %c0_i32 = arith.constant 0 : i32
    %c0_i32_0 = arith.constant 0 : i32
    return %arg0, %c0_i32 : i32, i32
  }
}

</mosaic_0001>

<llo_original>
// kernel: tpu_custom_call.1
$region0: #{tpu_custom_call.1}
  #allocation0 [shape = 'u32[]', space=smem, size = 0x4, offset = 0x4, fixed_abs, tag = 'smem constant byte address 0x4 - core index']
  #allocation1 [shape = 'u32[144,128]{1,0:T(1,128)}', space=vmem, size = 0x12000, scoped, tag = 'internal scratch']
  %s0 = inlined_call_operand.vmem [shape: f32[16,512], index: 0, kind: input, shape index: {}]
  %s1 = inlined_call_operand.hbm [shape: f32[512,256], index: 1, kind: input, shape index: {}]
  %s2 = inlined_call_operand.vmem [shape: f32[512,4], index: 2, kind: input, shape index: {}]
  %s3 = inlined_call_operand.vmem [shape: f32[4,256], index: 3, kind: input, shape index: {}]
  %s4 = inlined_call_operand.vmem [shape: f32[4,256], index: 4, kind: input, shape index: {}]
  %s5 = inlined_call_operand.vmem [shape: f32[1,256], index: 5, kind: input, shape index: {}]
  %s6 = inlined_call_operand.hbm [shape: f32[16,256], index: 6, kind: output, shape index: {}]
  %s7 = sld [smem:[#allocation0]]
  $region61: #{tpu_custom_call.1} parent=0
    _
  %s9 = ssub.s32 1, %s7
  %s10 = scalar_select 0, %s9, %s7
  $region1: #{tpu_custom_call.1} parent=0
    #allocation2 [shape = 'u8[524288]{0}', space=vmem, size = 0x80000, scoped, tag = 'input window, operand 1, single buffered']
    #allocation3 [shape = 's32[2]{0}', space=sflag, size = 0x8, scoped, tag = 'scoped memory for tpu_custom_call.1']
    #allocation4 [shape = 's32[2]{0}', space=sflag, size = 0x8, scoped, tag = 'scoped memory for tpu_custom_call.1']
    #allocation5 [shape = 'u8[16384]{0}', space=vmem, size = 0x4000, scoped, tag = 'output window, operand 0']
    %11 = vsyncpa [#allocation3], 0
    %12 = vsyncpa [#allocation4], 0
    %s13 = scalar_lea.sflag [#allocation4], 1
    %14 = vsyncpa %s13, 0
    loop: start=0, step=1, limit=4
    $region2: #{tpu_custom_call.1} parent=1 // loop_pre_header
      _
    $region3: #{tpu_custom_call.1} parent=1 // loop_header
      %s16 = sphi 0, %s20
      %p17 = scmp.ge.s32.totalorder %s16, 4
      %s26 = sphi 0, %s28
      %s29 = sphi 0, %s26
      %s30 = sphi 0, %s29
      %s46 = sphi 0, %s30
      %s50 = sphi 0, %s50
      %s52 = sphi 0, %s50
      %s53 = sphi 0, %s52
      %s67 = sphi 0, %s53
      %s71 = sphi 0, %s71
      %s73 = sphi 0, %s71
      %s74 = sphi 0, %s73
      %s88 = sphi 0, %s74
      %s92 = sphi 0, %s92
      %s94 = sphi 0, %s92
      %s95 = sphi 0, %s94
      %s109 = sphi 0, %s95
      %s113 = sphi 0, %s113
      %s115 = sphi 0, %s113
      %s116 = sphi 0, %s115
      %s130 = sphi 0, %s116
      %s134 = sphi 0, %s134
      %s136 = sphi 0, %s134
      %s137 = sphi 0, %s136
      %s151 = sphi 0, %s137
      %s157 = sphi 0, %s159
      %s160 = sphi 0, %s157
      %s161 = sphi 0, %s160
      %s177 = sphi 0, %s161
    $region4: #{tpu_custom_call.1} parent=1 // loop_header_branch
      %19 = sbr.rel (%p17) target = $region8
    $region5: #{tpu_custom_call.1} parent=1 // loop_body
      %s21 = ssub.s32 %s16, 1
      %s22 = ssub.s32 %s16, 2
      %s23 = sadd.s32 %s16, 1
      %s24 = ssub.s32 %s16, %s23
      %p25 = scmp.eq.s32.totalorder %s24, 0
      %s27 = sadd.s32 %s26, 1
      %s28 = scalar_select %p25, %s26, %s27
      %p31 = pneg %p25
      %p32 = scmp.eq.s32.totalorder %s16, 1
      %p33 = por %p31, %p32
      %p34 = scmp.ne.s32.totalorder %s26, %s29
      %p35 = scmp.eq.s32.totalorder %s16, 0
      %p36 = por %p34, %p35
      %p37 = scmp.ne.s32.totalorder %s26, %s29
      %p38 = scmp.eq.s32.totalorder %s21, 1
      %p39 = por %p37, %p38
      %p40 = scmp.ne.s32.totalorder %s29, %s30
      %p41 = scmp.eq.s32.totalorder %s21, 0
      %p42 = por %p40, %p41
      %p43 = scmp.ne.s32.totalorder %s29, %s30
      %p44 = scmp.eq.s32.totalorder %s22, 1
      %p45 = por %p43, %p44
      %p47 = scmp.ne.s32.totalorder %s30, %s46
      %p48 = scmp.eq.s32.totalorder %s22, 0
      %p49 = por %p47, %p48
      %s51 = sadd.s32 %s50, 1
      %p54 = scmp.eq.s32.totalorder %s16, 1
      %p55 = scmp.ne.s32.totalorder %s50, %s52
      %p56 = scmp.eq.s32.totalorder %s16, 0
      %p57 = por %p55, %p56
      %p58 = scmp.ne.s32.totalorder %s50, %s52
      %p59 = scmp.eq.s32.totalorder %s21, 1
      %p60 = por %p58, %p59
      %p61 = scmp.ne.s32.totalorder %s52, %s53
      %p62 = scmp.eq.s32.totalorder %s21, 0
      %p63 = por %p61, %p62
      %p64 = scmp.ne.s32.totalorder %s52, %s53
      %p65 = scmp.eq.s32.totalorder %s22, 1
      %p66 = por %p64, %p65
      %p68 = scmp.ne.s32.totalorder %s53, %s67
      %p69 = scmp.eq.s32.totalorder %s22, 0
      %p70 = por %p68, %p69
      %s72 = sadd.s32 %s71, 1
      %p75 = scmp.eq.s32.totalorder %s16, 1
      %p76 = scmp.ne.s32.totalorder %s71, %s73
      %p77 = scmp.eq.s32.totalorder %s16, 0
      %p78 = por %p76, %p77
      %p79 = scmp.ne.s32.totalorder %s71, %s73
      %p80 = scmp.eq.s32.totalorder %s21, 1
      %p81 = por %p79, %p80
      %p82 = scmp.ne.s32.totalorder %s73, %s74
      %p83 = scmp.eq.s32.totalorder %s21, 0
      %p84 = por %p82, %p83
      %p85 = scmp.ne.s32.totalorder %s73, %s74
      %p86 = scmp.eq.s32.totalorder %s22, 1
      %p87 = por %p85, %p86
      %p89 = scmp.ne.s32.totalorder %s74, %s88
      %p90 = scmp.eq.s32.totalorder %s22, 0
      %p91 = por %p89, %p90
      %s93 = sadd.s32 %s92, 1
      %p96 = scmp.eq.s32.totalorder %s16, 1
      %p97 = scmp.ne.s32.totalorder %s92, %s94
      %p98 = scmp.eq.s32.totalorder %s16, 0
      %p99 = por %p97, %p98
      %p100 = scmp.ne.s32.totalorder %s92, %s94
      %p101 = scmp.eq.s32.totalorder %s21, 1
      %p102 = por %p100, %p101
      %p103 = scmp.ne.s32.totalorder %s94, %s95
      %p104 = scmp.eq.s32.totalorder %s21, 0
      %p105 = por %p103, %p104
      %p106 = scmp.ne.s32.totalorder %s94, %s95
      %p107 = scmp.eq.s32.totalorder %s22, 1
      %p108 = por %p106, %p107
      %p110 = scmp.ne.s32.totalorder %s95, %s109
      %p111 = scmp.eq.s32.totalorder %s22, 0
      %p112 = por %p110, %p111
      %s114 = sadd.s32 %s113, 1
      %p117 = scmp.eq.s32.totalorder %s16, 1
      %p118 = scmp.ne.s32.totalorder %s113, %s115
      %p119 = scmp.eq.s32.totalorder %s16, 0
      %p120 = por %p118, %p119
      %p121 = scmp.ne.s32.totalorder %s113, %s115
      %p122 = scmp.eq.s32.totalorder %s21, 1
      %p123 = por %p121, %p122
      %p124 = scmp.ne.s32.totalorder %s115, %s116
      %p125 = scmp.eq.s32.totalorder %s21, 0
      %p126 = por %p124, %p125
      %p127 = scmp.ne.s32.totalorder %s115, %s116
      %p128 = scmp.eq.s32.totalorder %s22, 1
      %p129 = por %p127, %p128
      %p131 = scmp.ne.s32.totalorder %s116, %s130
      %p132 = scmp.eq.s32.totalorder %s22, 0
      %p133 = por %p131, %p132
      %s135 = sadd.s32 %s134, 1
      %p138 = scmp.eq.s32.totalorder %s16, 1
      %p139 = scmp.ne.s32.totalorder %s134, %s136
      %p140 = scmp.eq.s32.totalorder %s16, 0
      %p141 = por %p139, %p140
      %p142 = scmp.ne.s32.totalorder %s134, %s136
      %p143 = scmp.eq.s32.totalorder %s21, 1
      %p144 = por %p142, %p143
      %p145 = scmp.ne.s32.totalorder %s136, %s137
      %p146 = scmp.eq.s32.totalorder %s21, 0
      %p147 = por %p145, %p146
      %p148 = scmp.ne.s32.totalorder %s136, %s137
      %p149 = scmp.eq.s32.totalorder %s22, 1
      %p150 = por %p148, %p149
      %p152 = scmp.ne.s32.totalorder %s137, %s151
      %p153 = scmp.eq.s32.totalorder %s22, 0
      %p154 = por %p152, %p153
      %s155 = ssub.s32 %s16, %s23
      %p156 = scmp.eq.s32.totalorder %s155, 0
      %s158 = sadd.s32 %s157, 1
      %s159 = scalar_select %p156, %s157, %s158
      %p162 = pneg %p156
      %p163 = scmp.eq.s32.totalorder %s16, 1
      %p164 = por %p162, %p163
      %p165 = scmp.ne.s32.totalorder %s157, %s160
      %p166 = scmp.eq.s32.totalorder %s16, 0
      %p167 = por %p165, %p166
      %p168 = scmp.ne.s32.totalorder %s157, %s160
      %p169 = scmp.eq.s32.totalorder %s21, 1
      %p170 = por %p168, %p169
      %p171 = scmp.ne.s32.totalorder %s160, %s161
      %p172 = scmp.eq.s32.totalorder %s21, 0
      %p173 = por %p171, %p172
      %p174 = scmp.ne.s32.totalorder %s160, %s161
      %p175 = scmp.eq.s32.totalorder %s22, 1
      %p176 = por %p174, %p175
      %p178 = scmp.ne.s32.totalorder %s161, %s177
      %p179 = scmp.eq.s32.totalorder %s22, 0
      %p180 = por %p178, %p179
      %p181 = scmp.le.s32.totalorder 1, %s16
      %p182 = scmp.lt.s32.totalorder %s16, 3
      %p183 = pnand %p181, %p182
      %p184 = pneg %p183
      // Predicated region
      $region9: #{tpu_custom_call.1} parent=5 // pred_check
        _
      $region10: #{tpu_custom_call.1} parent=5 // pred_check_branch
        %186 = sbr.rel (%p183) target = $region12
      $region11: #{tpu_custom_call.1} parent=5 // pred_region
        %s187 = ssub.s32 %s16, 1
        // Predicated region
        $region13: #{tpu_custom_call.1} parent=11 // pred_check
          %p188 = pneg %p63
        $region14: #{tpu_custom_call.1} parent=11 // pred_check_branch
          %190 = sbr.rel (%p188) target = $region16
        $region15: #{tpu_custom_call.1} parent=11 // pred_region
          %s192 = ssub.s32 16384, 16384
          %193 = vsyncadd [#allocation3], %s192
          %s194 = sshll.u32 [#allocation2], 4
          %s195 = int_to_ptr.vmem [resolvable:$true] %s194
          %200 = dma.hbm_to_vmem [thread:$0]  %s1, 16384, %s195, [#allocation3], 256, 256, 16
        $region16: #{tpu_custom_call.1} parent=11 // pred_fallthru
          _
        // Predicated region
        $region17: #{tpu_custom_call.1} parent=11 // pred_check
          %p201 = pneg %p84
        $region18: #{tpu_custom_call.1} parent=11 // pred_check_branch
          %203 = sbr.rel (%p201) target = $region20
        $region19: #{tpu_custom_call.1} parent=11 // pred_region
          _
        $region20: #{tpu_custom_call.1} parent=11 // pred_fallthru
          _
        // Predicated region
        $region21: #{tpu_custom_call.1} parent=11 // pred_check
          %p204 = pneg %p105
        $region22: #{tpu_custom_call.1} parent=11 // pred_check_branch
          %206 = sbr.rel (%p204) target = $region24
        $region23: #{tpu_custom_call.1} parent=11 // pred_region
          _
        $region24: #{tpu_custom_call.1} parent=11 // pred_fallthru
          _
        // Predicated region
        $region25: #{tpu_custom_call.1} parent=11 // pred_check
          %p207 = pneg %p126
        $region26: #{tpu_custom_call.1} parent=11 // pred_check_branch
          %209 = sbr.rel (%p207) target = $region28
        $region27: #{tpu_custom_call.1} parent=11 // pred_region
          _
        $region28: #{tpu_custom_call.1} parent=11 // pred_fallthru
          _
        // Predicated region
        $region29: #{tpu_custom_call.1} parent=11 // pred_check
          %p210 = pneg %p147
        $region30: #{tpu_custom_call.1} parent=11 // pred_check_branch
          %212 = sbr.rel (%p210) target = $region32
        $region31: #{tpu_custom_call.1} parent=11 // pred_region
          _
        $region32: #{tpu_custom_call.1} parent=11 // pred_fallthru
          _
      $region12: #{tpu_custom_call.1} parent=5 // pred_fallthru
        _
      %p213 = scmp.lt.s32.totalorder %s16, 2
      // Predicated region
      $region33: #{tpu_custom_call.1} parent=5 // pred_check
        %p214 = pneg %p213
      $region34: #{tpu_custom_call.1} parent=5 // pred_check_branch
        %216 = sbr.rel (%p214) target = $region36
      $region35: #{tpu_custom_call.1} parent=5 // pred_region
        // Predicated region
        $region37: #{tpu_custom_call.1} parent=35 // pred_check
          %p217 = pneg %p36
        $region38: #{tpu_custom_call.1} parent=35 // pred_check_branch
          %219 = sbr.rel (%p217) target = $region40
        $region39: #{tpu_custom_call.1} parent=35 // pred_region
          %p220 = scmp.lt.s32.totalorder %s16, 1
          %s221 = scalar_select %p220, %s16, 1
          %s222 = smul.addr %s221, 4
          %s223 = smul.addr %s222, 8
          %s224 = scalar_lea.vmem %s0, %s223
        $region40: #{tpu_custom_call.1} parent=35 // pred_fallthru
          _
      $region36: #{tpu_custom_call.1} parent=5 // pred_fallthru
        _
      %p225 = scmp.le.s32.totalorder 1, %s16
      %p226 = scmp.lt.s32.totalorder %s16, 3
      %p227 = pnand %p225, %p226
      %p228 = pneg %p227
      // Predicated region
      $region41: #{tpu_custom_call.1} parent=5 // pred_check
        _
      $region42: #{tpu_custom_call.1} parent=5 // pred_check_branch
        %230 = sbr.rel (%p227) target = $region44
      $region43: #{tpu_custom_call.1} parent=5 // pred_region
        %s231 = ssub.s32 %s16, 1
        // Predicated region
        $region45: #{tpu_custom_call.1} parent=43 // pred_check
          %p232 = pneg %p63
        $region46: #{tpu_custom_call.1} parent=43 // pred_check_branch
          %234 = sbr.rel (%p232) target = $region48
        $region47: #{tpu_custom_call.1} parent=43 // pred_region
          %235 = dma.done [#allocation3], 16384
        $region48: #{tpu_custom_call.1} parent=43 // pred_fallthru
          _
        %p236 = scmp.lt.s32.totalorder %s21, 1
        %s237 = scalar_select %p236, %s21, 1
        %s238 = smul.addr %s237, 4
        %s239 = smul.addr %s238, 8
        %s240 = scalar_lea.vmem %s0, %s239
        %p241 = pneg %p42
        %p242 = pneg %p39
        %p243 = pneg %p63
        %p244 = pneg %p60
        %p245 = pneg %p84
        %p246 = pneg %p81
        %p247 = pneg %p105
        %p248 = pneg %p102
        %p249 = pneg %p126
        %p250 = pneg %p123
        %p251 = pneg %p147
        %p252 = pneg %p144
        %p253 = pneg %p173
        %p254 = pneg %p170
        %s255 = sand.u32 %s160, 1
        %s256 = scalar_lea.sflag [#allocation4], %s255
        %s257 = sand.u32 %s160, 1
        %s258 = smul.addr %s257, 16
        %s259 = scalar_lea.vmem [#allocation5], %s258
        %p260 = scmp.lt.s32.totalorder %s21, 1
        %s261 = scalar_select %p260, %s21, 1
        %s262 = smul.addr %s261, 4
        %s263 = smul.addr %s262, 8
        %s264 = scalar_lea.vmem %s0, %s263
        %v265 = vld [vmem:[%s264] sm:$0xff]
        %v266 = vld [vmem:[%s264 + $0x8] sm:$0xff]
        %v267 = vld [vmem:[%s264 + $0x10] sm:$0xff]
        %v268 = vld [vmem:[%s264 + $0x18] sm:$0xff]
        %v269 = vld [vmem:[%s2] sm:$0xff]
        %v270 = vld [vmem:[%s2 + $0x8] sm:$0xff]
        %v271 = vld [vmem:[%s2 + $0x10] sm:$0xff]
        %v272 = vld [vmem:[%s2 + $0x18] sm:$0xff]
        %v273 = vld [vmem:[%s2 + $0x20] sm:$0xff]
        %v274 = vld [vmem:[%s2 + $0x28] sm:$0xff]
        %v275 = vld [vmem:[%s2 + $0x30] sm:$0xff]
        %v276 = vld [vmem:[%s2 + $0x38] sm:$0xff]
        %v277 = vld [vmem:[%s2 + $0x40] sm:$0xff]
        %v278 = vld [vmem:[%s2 + $0x48] sm:$0xff]
        %v279 = vld [vmem:[%s2 + $0x50] sm:$0xff]
        %v280 = vld [vmem:[%s2 + $0x58] sm:$0xff]
        %v281 = vld [vmem:[%s2 + $0x60] sm:$0xff]
        %v282 = vld [vmem:[%s2 + $0x68] sm:$0xff]
        %v283 = vld [vmem:[%s2 + $0x70] sm:$0xff]
        %v284 = vld [vmem:[%s2 + $0x78] sm:$0xff]
        %v285 = vld [vmem:[%s2 + $0x80] sm:$0xff]
        %v286 = vld [vmem:[%s2 + $0x88] sm:$0xff]
        %v287 = vld [vmem:[%s2 + $0x90] sm:$0xff]
        %v288 = vld [vmem:[%s2 + $0x98] sm:$0xff]
        %v289 = vld [vmem:[%s2 + $0xa0] sm:$0xff]
        %v290 = vld [vmem:[%s2 + $0xa8] sm:$0xff]
        %v291 = vld [vmem:[%s2 + $0xb0] sm:$0xff]
        %v292 = vld [vmem:[%s2 + $0xb8] sm:$0xff]
        %v293 = vld [vmem:[%s2 + $0xc0] sm:$0xff]
        %v294 = vld [vmem:[%s2 + $0xc8] sm:$0xff]
        %v295 = vld [vmem:[%s2 + $0xd0] sm:$0xff]
        %v296 = vld [vmem:[%s2 + $0xd8] sm:$0xff]
        %v297 = vld [vmem:[%s2 + $0xe0] sm:$0xff]
        %v298 = vld [vmem:[%s2 + $0xe8] sm:$0xff]
        %v299 = vld [vmem:[%s2 + $0xf0] sm:$0xff]
        %v300 = vld [vmem:[%s2 + $0xf8] sm:$0xff]
        %v301 = vld [vmem:[%s2 + $0x100] sm:$0xff]
        %v302 = vld [vmem:[%s2 + $0x108] sm:$0xff]
        %v303 = vld [vmem:[%s2 + $0x110] sm:$0xff]
        %v304 = vld [vmem:[%s2 + $0x118] sm:$0xff]
        %v305 = vld [vmem:[%s2 + $0x120] sm:$0xff]
        %v306 = vld [vmem:[%s2 + $0x128] sm:$0xff]
        %v307 = vld [vmem:[%s2 + $0x130] sm:$0xff]
        %v308 = vld [vmem:[%s2 + $0x138] sm:$0xff]
        %v309 = vld [vmem:[%s2 + $0x140] sm:$0xff]
        %v310 = vld [vmem:[%s2 + $0x148] sm:$0xff]
        %v311 = vld [vmem:[%s2 + $0x150] sm:$0xff]
        %v312 = vld [vmem:[%s2 + $0x158] sm:$0xff]
        %v313 = vld [vmem:[%s2 + $0x160] sm:$0xff]
        %v314 = vld [vmem:[%s2 + $0x168] sm:$0xff]
        %v315 = vld [vmem:[%s2 + $0x170] sm:$0xff]
        %v316 = vld [vmem:[%s2 + $0x178] sm:$0xff]
        %v317 = vld [vmem:[%s2 + $0x180] sm:$0xff]
        %v318 = vld [vmem:[%s2 + $0x188] sm:$0xff]
        %v319 = vld [vmem:[%s2 + $0x190] sm:$0xff]
        %v320 = vld [vmem:[%s2 + $0x198] sm:$0xff]
        %v321 = vld [vmem:[%s2 + $0x1a0] sm:$0xff]
        %v322 = vld [vmem:[%s2 + $0x1a8] sm:$0xff]
        %v323 = vld [vmem:[%s2 + $0x1b0] sm:$0xff]
        %v324 = vld [vmem:[%s2 + $0x1b8] sm:$0xff]
        %v325 = vld [vmem:[%s2 + $0x1c0] sm:$0xff]
        %v326 = vld [vmem:[%s2 + $0x1c8] sm:$0xff]
        %v327 = vld [vmem:[%s2 + $0x1d0] sm:$0xff]
        %v328 = vld [vmem:[%s2 + $0x1d8] sm:$0xff]
        %v329 = vld [vmem:[%s2 + $0x1e0] sm:$0xff]
        %v330 = vld [vmem:[%s2 + $0x1e8] sm:$0xff]
        %v331 = vld [vmem:[%s2 + $0x1f0] sm:$0xff]
        %v332 = vld [vmem:[%s2 + $0x1f8] sm:$0xff]
        %333 = vmatprep.subr.mxu0 0.0
        %334 = vmatpush1.msra.mxu0 %v284
        %335 = vmatprep.subr.mxu0 0.0
        %336 = vmatpush1.msra.mxu0 %v283
        %337 = vmatprep.subr.mxu0 0.0
        %338 = vmatpush1.msra.mxu0 %v282
        %339 = vmatprep.subr.mxu0 0.0
        %340 = vmatpush1.msra.mxu0 %v281
        %341 = vmatprep.subr.mxu0 0.0
        %342 = vmatpush1.msra.mxu0 %v280
        %343 = vmatprep.subr.mxu0 0.0
        %344 = vmatpush1.msra.mxu0 %v279
        %345 = vmatprep.subr.mxu0 0.0
        %346 = vmatpush1.msra.mxu0 %v278
        %347 = vmatprep.subr.mxu0 0.0
        %348 = vmatpush1.msra.mxu0 %v277
        %349 = vmatprep.subr.mxu0 0.0
        %350 = vmatpush1.msra.mxu0 %v276
        %351 = vmatprep.subr.mxu0 0.0
        %352 = vmatpush1.msra.mxu0 %v275
        %353 = vmatprep.subr.mxu0 0.0
        %354 = vmatpush1.msra.mxu0 %v274
        %355 = vmatprep.subr.mxu0 0.0
        %356 = vmatpush1.msra.mxu0 %v273
        %357 = vmatprep.subr.mxu0 0.0
        %358 = vmatpush1.msra.mxu0 %v272
        %359 = vmatprep.subr.mxu0 0.0
        %360 = vmatpush1.msra.mxu0 %v271
        %361 = vmatprep.subr.mxu0 0.0
        %362 = vmatpush1.msra.mxu0 %v270
        %363 = vmatprep.subr.mxu0 0.0
        %364 = vmatpush1.msra.mxu0 %v269
        %365 = vmatprep.subr.mxu0 0.0
        %366 = vmatpush2.msra.mxu0 %v300
        %367 = vmatprep.subr.mxu0 0.0
        %368 = vmatpush2.msra.mxu0 %v299
        %369 = vmatprep.subr.mxu0 0.0
        %370 = vmatpush2.msra.mxu0 %v298
        %371 = vmatprep.subr.mxu0 0.0
        %372 = vmatpush2.msra.mxu0 %v297
        %373 = vmatprep.subr.mxu0 0.0
        %374 = vmatpush2.msra.mxu0 %v296
        %375 = vmatprep.subr.mxu0 0.0
        %376 = vmatpush2.msra.mxu0 %v295
        %377 = vmatprep.subr.mxu0 0.0
        %378 = vmatpush2.msra.mxu0 %v294
        %379 = vmatprep.subr.mxu0 0.0
        %380 = vmatpush2.msra.mxu0 %v293
        %381 = vmatprep.subr.mxu0 0.0
        %382 = vmatpush2.msra.mxu0 %v292
        %383 = vmatprep.subr.mxu0 0.0
        %384 = vmatpush2.msra.mxu0 %v291
        %385 = vmatprep.subr.mxu0 0.0
        %386 = vmatpush2.msra.mxu0 %v290
        %387 = vmatprep.subr.mxu0 0.0
        %388 = vmatpush2.msra.mxu0 %v289
        %389 = vmatprep.subr.mxu0 0.0
        %390 = vmatpush2.msra.mxu0 %v288
        %391 = vmatprep.subr.mxu0 0.0
        %392 = vmatpush2.msra.mxu0 %v287
        %393 = vmatprep.subr.mxu0 0.0
        %394 = vmatpush2.msra.mxu0 %v286
        %395 = vmatprep.subr.mxu0 0.0
        %396 = vmatpush2.msra.mxu0 %v285
        %397 = vmatprep.mubr.f32.mxu0 %v266
        %398 = vmatmul.mubr.f32.gmra.mxu0 %v265
        %v399 = vpop.f32.mrf.mxu0
        %v400 = vadd.f32 0.0, %v399
        %v401 = vpop.f32.mrf.mxu0
        %402 = vdwg.mxu0
        %403 = vmatprep.subr.mxu0 0.0
        %404 = vmatpush1.msra.mxu0 %v316
        %405 = vmatprep.subr.mxu0 0.0
        %406 = vmatpush1.msra.mxu0 %v315
        %407 = vmatprep.subr.mxu0 0.0
        %408 = vmatpush1.msra.mxu0 %v314
        %409 = vmatprep.subr.mxu0 0.0
        %410 = vmatpush1.msra.mxu0 %v313
        %411 = vmatprep.subr.mxu0 0.0
        %412 = vmatpush1.msra.mxu0 %v312
        %413 = vmatprep.subr.mxu0 0.0
        %414 = vmatpush1.msra.mxu0 %v311
        %415 = vmatprep.subr.mxu0 0.0
        %416 = vmatpush1.msra.mxu0 %v310
        %417 = vmatprep.subr.mxu0 0.0
        %418 = vmatpush1.msra.mxu0 %v309
        %419 = vmatprep.subr.mxu0 0.0
        %420 = vmatpush1.msra.mxu0 %v308
        %421 = vmatprep.subr.mxu0 0.0
        %422 = vmatpush1.msra.mxu0 %v307
        %423 = vmatprep.subr.mxu0 0.0
        %424 = vmatpush1.msra.mxu0 %v306
        %425 = vmatprep.subr.mxu0 0.0
        %426 = vmatpush1.msra.mxu0 %v305
        %427 = vmatprep.subr.mxu0 0.0
        %428 = vmatpush1.msra.mxu0 %v304
        %429 = vmatprep.subr.mxu0 0.0
        %430 = vmatpush1.msra.mxu0 %v303
        %431 = vmatprep.subr.mxu0 0.0
        %432 = vmatpush1.msra.mxu0 %v302
        %433 = vmatprep.subr.mxu0 0.0
        %434 = vmatpush1.msra.mxu0 %v301
        %435 = vmatprep.subr.mxu0 0.0
        %436 = vmatpush2.msra.mxu0 %v332
        %437 = vmatprep.subr.mxu0 0.0
        %438 = vmatpush2.msra.mxu0 %v331
        %439 = vmatprep.subr.mxu0 0.0
        %440 = vmatpush2.msra.mxu0 %v330
        %441 = vmatprep.subr.mxu0 0.0
        %442 = vmatpush2.msra.mxu0 %v329
        %443 = vmatprep.subr.mxu0 0.0
        %444 = vmatpush2.msra.mxu0 %v328
        %445 = vmatprep.subr.mxu0 0.0
        %446 = vmatpush2.msra.mxu0 %v327
        %447 = vmatprep.subr.mxu0 0.0
        %448 = vmatpush2.msra.mxu0 %v326
        %449 = vmatprep.subr.mxu0 0.0
        %450 = vmatpush2.msra.mxu0 %v325
        %451 = vmatprep.subr.mxu0 0.0
        %452 = vmatpush2.msra.mxu0 %v324
        %453 = vmatprep.subr.mxu0 0.0
        %454 = vmatpush2.msra.mxu0 %v323
        %455 = vmatprep.subr.mxu0 0.0
        %456 = vmatpush2.msra.mxu0 %v322
        %457 = vmatprep.subr.mxu0 0.0
        %458 = vmatpush2.msra.mxu0 %v321
        %459 = vmatprep.subr.mxu0 0.0
        %460 = vmatpush2.msra.mxu0 %v320
        %461 = vmatprep.subr.mxu0 0.0
        %462 = vmatpush2.msra.mxu0 %v319
        %463 = vmatprep.subr.mxu0 0.0
        %464 = vmatpush2.msra.mxu0 %v318
        %465 = vmatprep.subr.mxu0 0.0
        %466 = vmatpush2.msra.mxu0 %v317
        %467 = vmatprep.mubr.f32.mxu0 %v268
        %468 = vmatmul.mubr.f32.gmra.mxu0 %v267
        %v469 = vpop.f32.mrf.mxu0
        %v470 = vadd.f32 %v400, %v469
        %v471 = vpop.f32.mrf.mxu0
        %472 = vdwg.mxu0
        %v473 = vmul.f32 %v470, 0.0078125
        %v474 = vmul.f32 %v265, %v265
        %v475 = vmul.f32 %v266, %v266
        %v476 = vmul.f32 %v267, %v267
        %v477 = vmul.f32 %v268, %v268
        %478 = vmatprep.subr.mxu0 0.0
        %479 = vmatpush1.msra.mxu0 %v284
        %480 = vmatprep.subr.mxu0 0.0
        %481 = vmatpush1.msra.mxu0 %v283
        %482 = vmatprep.subr.mxu0 0.0
        %483 = vmatpush1.msra.mxu0 %v282
        %484 = vmatprep.subr.mxu0 0.0
        %485 = vmatpush1.msra.mxu0 %v281
        %486 = vmatprep.subr.mxu0 0.0
        %487 = vmatpush1.msra.mxu0 %v280
        %488 = vmatprep.subr.mxu0 0.0
        %489 = vmatpush1.msra.mxu0 %v279
        %490 = vmatprep.subr.mxu0 0.0
        %491 = vmatpush1.msra.mxu0 %v278
        %492 = vmatprep.subr.mxu0 0.0
        %493 = vmatpush1.msra.mxu0 %v277
        %494 = vmatprep.subr.mxu0 0.0
        %495 = vmatpush1.msra.mxu0 %v276
        %496 = vmatprep.subr.mxu0 0.0
        %497 = vmatpush1.msra.mxu0 %v275
        %498 = vmatprep.subr.mxu0 0.0
        %499 = vmatpush1.msra.mxu0 %v274
        %500 = vmatprep.subr.mxu0 0.0
        %501 = vmatpush1.msra.mxu0 %v273
        %502 = vmatprep.subr.mxu0 0.0
        %503 = vmatpush1.msra.mxu0 %v272
        %504 = vmatprep.subr.mxu0 0.0
        %505 = vmatpush1.msra.mxu0 %v271
        %506 = vmatprep.subr.mxu0 0.0
        %507 = vmatpush1.msra.mxu0 %v270
        %508 = vmatprep.subr.mxu0 0.0
        %509 = vmatpush1.msra.mxu0 %v269
        %510 = vmatprep.subr.mxu0 0.0
        %511 = vmatpush2.msra.mxu0 %v300
        %512 = vmatprep.subr.mxu0 0.0
        %513 = vmatpush2.msra.mxu0 %v299
        %514 = vmatprep.subr.mxu0 0.0
        %515 = vmatpush2.msra.mxu0 %v298
        %516 = vmatprep.subr.mxu0 0.0
        %517 = vmatpush2.msra.mxu0 %v297
        %518 = vmatprep.subr.mxu0 0.0
        %519 = vmatpush2.msra.mxu0 %v296
        %520 = vmatprep.subr.mxu0 0.0
        %521 = vmatpush2.msra.mxu0 %v295
        %522 = vmatprep.subr.mxu0 0.0
        %523 = vmatpush2.msra.mxu0 %v294
        %524 = vmatprep.subr.mxu0 0.0
        %525 = vmatpush2.msra.mxu0 %v293
        %526 = vmatprep.subr.mxu0 0.0
        %527 = vmatpush2.msra.mxu0 %v292
        %528 = vmatprep.subr.mxu0 0.0
        %529 = vmatpush2.msra.mxu0 %v291
        %530 = vmatprep.subr.mxu0 0.0
        %531 = vmatpush2.msra.mxu0 %v290
        %532 = vmatprep.subr.mxu0 0.0
        %533 = vmatpush2.msra.mxu0 %v289
        %534 = vmatprep.subr.mxu0 0.0
        %535 = vmatpush2.msra.mxu0 %v288
        %536 = vmatprep.subr.mxu0 0.0
        %537 = vmatpush2.msra.mxu0 %v287
        %538 = vmatprep.subr.mxu0 0.0
        %539 = vmatpush2.msra.mxu0 %v286
        %540 = vmatprep.subr.mxu0 0.0
        %541 = vmatpush2.msra.mxu0 %v285
        %542 = vmatprep.mubr.f32.mxu0 %v475
        %543 = vmatmul.mubr.f32.gmra.mxu0 %v474
        %v544 = vpop.f32.mrf.mxu0
        %v545 = vadd.f32 0.0, %v544
        %v546 = vpop.f32.mrf.mxu0
        %547 = vdwg.mxu0
        %548 = vmatprep.subr.mxu0 0.0
        %549 = vmatpush1.msra.mxu0 %v316
        %550 = vmatprep.subr.mxu0 0.0
        %551 = vmatpush1.msra.mxu0 %v315
        %552 = vmatprep.subr.mxu0 0.0
        %553 = vmatpush1.msra.mxu0 %v314
        %554 = vmatprep.subr.mxu0 0.0
        %555 = vmatpush1.msra.mxu0 %v313
        %556 = vmatprep.subr.mxu0 0.0
        %557 = vmatpush1.msra.mxu0 %v312
        %558 = vmatprep.subr.mxu0 0.0
        %559 = vmatpush1.msra.mxu0 %v311
        %560 = vmatprep.subr.mxu0 0.0
        %561 = vmatpush1.msra.mxu0 %v310
        %562 = vmatprep.subr.mxu0 0.0
        %563 = vmatpush1.msra.mxu0 %v309
        %564 = vmatprep.subr.mxu0 0.0
        %565 = vmatpush1.msra.mxu0 %v308
        %566 = vmatprep.subr.mxu0 0.0
        %567 = vmatpush1.msra.mxu0 %v307
        %568 = vmatprep.subr.mxu0 0.0
        %569 = vmatpush1.msra.mxu0 %v306
        %570 = vmatprep.subr.mxu0 0.0
        %571 = vmatpush1.msra.mxu0 %v305
        %572 = vmatprep.subr.mxu0 0.0
        %573 = vmatpush1.msra.mxu0 %v304
        %574 = vmatprep.subr.mxu0 0.0
        %575 = vmatpush1.msra.mxu0 %v303
        %576 = vmatprep.subr.mxu0 0.0
        %577 = vmatpush1.msra.mxu0 %v302
        %578 = vmatprep.subr.mxu0 0.0
        %579 = vmatpush1.msra.mxu0 %v301
        %580 = vmatprep.subr.mxu0 0.0
        %581 = vmatpush2.msra.mxu0 %v332
        %582 = vmatprep.subr.mxu0 0.0
        %583 = vmatpush2.msra.mxu0 %v331
        %584 = vmatprep.subr.mxu0 0.0
        %585 = vmatpush2.msra.mxu0 %v330
        %586 = vmatprep.subr.mxu0 0.0
        %587 = vmatpush2.msra.mxu0 %v329
        %588 = vmatprep.subr.mxu0 0.0
        %589 = vmatpush2.msra.mxu0 %v328
        %590 = vmatprep.subr.mxu0 0.0
        %591 = vmatpush2.msra.mxu0 %v327
        %592 = vmatprep.subr.mxu0 0.0
        %593 = vmatpush2.msra.mxu0 %v326
        %594 = vmatprep.subr.mxu0 0.0
        %595 = vmatpush2.msra.mxu0 %v325
        %596 = vmatprep.subr.mxu0 0.0
        %597 = vmatpush2.msra.mxu0 %v324
        %598 = vmatprep.subr.mxu0 0.0
        %599 = vmatpush2.msra.mxu0 %v323
        %600 = vmatprep.subr.mxu0 0.0
        %601 = vmatpush2.msra.mxu0 %v322
        %602 = vmatprep.subr.mxu0 0.0
        %603 = vmatpush2.msra.mxu0 %v321
        %604 = vmatprep.subr.mxu0 0.0
        %605 = vmatpush2.msra.mxu0 %v320
        %606 = vmatprep.subr.mxu0 0.0
        %607 = vmatpush2.msra.mxu0 %v319
        %608 = vmatprep.subr.mxu0 0.0
        %609 = vmatpush2.msra.mxu0 %v318
        %610 = vmatprep.subr.mxu0 0.0
        %611 = vmatpush2.msra.mxu0 %v317
        %612 = vmatprep.mubr.f32.mxu0 %v477
        %613 = vmatmul.mubr.f32.gmra.mxu0 %v476
        %v614 = vpop.f32.mrf.mxu0
        %v615 = vadd.f32 %v545, %v614
        %v616 = vpop.f32.mrf.mxu0
        %617 = vdwg.mxu0
        %v618 = vmul.f32 %v615, 0.0078125
        %v619 = vmul.f32 %v473, %v473
        %v620 = vsub.f32 %v618, %v619
        %v621 = vadd.f32 %v620, 1e-05
        %v622 = vrsqrt.pop %v621
        %v623 = vld [vmem:[#allocation2] sm:$0xff]
        %v624 = vld [vmem:[#allocation2 + $0x8] sm:$0xff]
        %v625 = vld [vmem:[#allocation2 + $0x10] sm:$0xff]
        %v626 = vld [vmem:[#allocation2 + $0x18] sm:$0xff]
        %v627 = vld [vmem:[#allocation2 + $0x20] sm:$0xff]
        %v628 = vld [vmem:[#allocation2 + $0x28] sm:$0xff]
        %v629 = vld [vmem:[#allocation2 + $0x30] sm:$0xff]
        %v630 = vld [vmem:[#allocation2 + $0x38] sm:$0xff]
        %v631 = vld [vmem:[#allocation2 + $0x40] sm:$0xff]
        %v632 = vld [vmem:[#allocation2 + $0x48] sm:$0xff]
        %v633 = vld [vmem:[#allocation2 + $0x50] sm:$0xff]
        %v634 = vld [vmem:[#allocation2 + $0x58] sm:$0xff]
        %v635 = vld [vmem:[#allocation2 + $0x60] sm:$0xff]
        %v636 = vld [vmem:[#allocation2 + $0x68] sm:$0xff]
        %v637 = vld [vmem:[#allocation2 + $0x70] sm:$0xff]
        %v638 = vld [vmem:[#allocation2 + $0x78] sm:$0xff]
        %v639 = vld [vmem:[#allocation2 + $0x80] sm:$0xff]
        %v640 = vld [vmem:[#allocation2 + $0x88] sm:$0xff]
        %v641 = vld [vmem:[#allocation2 + $0x90] sm:$0xff]
        %v642 = vld [vmem:[#allocation2 + $0x98] sm:$0xff]
        %v643 = vld [vmem:[#allocation2 + $0xa0] sm:$0xff]
        %v644 = vld [vmem:[#allocation2 + $0xa8] sm:$0xff]
        %v645 = vld [vmem:[#allocation2 + $0xb0] sm:$0xff]
        %v646 = vld [vmem:[#allocation2 + $0xb8] sm:$0xff]
        %v647 = vld [vmem:[#allocation2 + $0xc0] sm:$0xff]
        %v648 = vld [vmem:[#allocation2 + $0xc8] sm:$0xff]
        %v649 = vld [vmem:[#allocation2 + $0xd0] sm:$0xff]
        %v650 = vld [vmem:[#allocation2 + $0xd8] sm:$0xff]
        %v651 = vld [vmem:[#allocation2 + $0xe0] sm:$0xff]
        %v652 = vld [vmem:[#allocation2 + $0xe8] sm:$0xff]
        %v653 = vld [vmem:[#allocation2 + $0xf0] sm:$0xff]
        %v654 = vld [vmem:[#allocation2 + $0xf8] sm:$0xff]
        %v655 = vld [vmem:[#allocation2 + $0x100] sm:$0xff]
        %v656 = vld [vmem:[#allocation2 + $0x108] sm:$0xff]
        %v657 = vld [vmem:[#allocation2 + $0x110] sm:$0xff]
        %v658 = vld [vmem:[#allocation2 + $0x118] sm:$0xff]
        %v659 = vld [vmem:[#allocation2 + $0x120] sm:$0xff]
        %v660 = vld [vmem:[#allocation2 + $0x128] sm:$0xff]
        %v661 = vld [vmem:[#allocation2 + $0x130] sm:$0xff]
        %v662 = vld [vmem:[#allocation2 + $0x138] sm:$0xff]
        %v663 = vld [vmem:[#allocation2 + $0x140] sm:$0xff]
        %v664 = vld [vmem:[#allocation2 + $0x148] sm:$0xff]
        %v665 = vld [vmem:[#allocation2 + $0x150] sm:$0xff]
        %v666 = vld [vmem:[#allocation2 + $0x158] sm:$0xff]
        %v667 = vld [vmem:[#allocation2 + $0x160] sm:$0xff]
        %v668 = vld [vmem:[#allocation2 + $0x168] sm:$0xff]
        %v669 = vld [vmem:[#allocation2 + $0x170] sm:$0xff]
        %v670 = vld [vmem:[#allocation2 + $0x178] sm:$0xff]
        %v671 = vld [vmem:[#allocation2 + $0x180] sm:$0xff]
        %v672 = vld [vmem:[#allocation2 + $0x188] sm:$0xff]
        %v673 = vld [vmem:[#allocation2 + $0x190] sm:$0xff]
        %v674 = vld [vmem:[#allocation2 + $0x198] sm:$0xff]
        %v675 = vld [vmem:[#allocation2 + $0x1a0] sm:$0xff]
        %v676 = vld [vmem:[#allocation2 + $0x1a8] sm:$0xff]
        %v677 = vld [vmem:[#allocation2 + $0x1b0] sm:$0xff]
        %v678 = vld [vmem:[#allocation2 + $0x1b8] sm:$0xff]
        %v679 = vld [vmem:[#allocation2 + $0x1c0] sm:$0xff]
        %v680 = vld [vmem:[#allocation2 + $0x1c8] sm:$0xff]
        %v681 = vld [vmem:[#allocation2 + $0x1d0] sm:$0xff]
        %v682 = vld [vmem:[#allocation2 + $0x1d8] sm:$0xff]
        %v683 = vld [vmem:[#allocation2 + $0x1e0] sm:$0xff]
        %v684 = vld [vmem:[#allocation2 + $0x1e8] sm:$0xff]
        %v685 = vld [vmem:[#allocation2 + $0x1f0] sm:$0xff]
        %v686 = vld [vmem:[#allocation2 + $0x1f8] sm:$0xff]
        %v687 = vld [vmem:[#allocation2 + $0x200] sm:$0xff]
        %v688 = vld [vmem:[#allocation2 + $0x208] sm:$0xff]
        %v689 = vld [vmem:[#allocation2 + $0x210] sm:$0xff]
        %v690 = vld [vmem:[#allocation2 + $0x218] sm:$0xff]
        %v691 = vld [vmem:[#allocation2 + $0x220] sm:$0xff]
        %v692 = vld [vmem:[#allocation2 + $0x228] sm:$0xff]
        %v693 = vld [vmem:[#allocation2 + $0x230] sm:$0xff]
        %v694 = vld [vmem:[#allocation2 + $0x238] sm:$0xff]
        %v695 = vld [vmem:[#allocation2 + $0x240] sm:$0xff]
        %v696 = vld [vmem:[#allocation2 + $0x248] sm:$0xff]
        %v697 = vld [vmem:[#allocation2 + $0x250] sm:$0xff]
        %v698 = vld [vmem:[#allocation2 + $0x258] sm:$0xff]
        %v699 = vld [vmem:[#allocation2 + $0x260] sm:$0xff]
        %v700 = vld [vmem:[#allocation2 + $0x268] sm:$0xff]
        %v701 = vld [vmem:[#allocation2 + $0x270] sm:$0xff]
        %v702 = vld [vmem:[#allocation2 + $0x278] sm:$0xff]
        %v703 = vld [vmem:[#allocation2 + $0x280] sm:$0xff]
        %v704 = vld [vmem:[#allocation2 + $0x288] sm:$0xff]
        %v705 = vld [vmem:[#allocation2 + $0x290] sm:$0xff]
        %v706 = vld [vmem:[#allocation2 + $0x298] sm:$0xff]
        %v707 = vld [vmem:[#allocation2 + $0x2a0] sm:$0xff]
        %v708 = vld [vmem:[#allocation2 + $0x2a8] sm:$0xff]
        %v709 = vld [vmem:[#allocation2 + $0x2b0] sm:$0xff]
        %v710 = vld [vmem:[#allocation2 + $0x2b8] sm:$0xff]
        %v711 = vld [vmem:[#allocation2 + $0x2c0] sm:$0xff]
        %v712 = vld [vmem:[#allocation2 + $0x2c8] sm:$0xff]
        %v713 = vld [vmem:[#allocation2 + $0x2d0] sm:$0xff]
        %v714 = vld [vmem:[#allocation2 + $0x2d8] sm:$0xff]
        %v715 = vld [vmem:[#allocation2 + $0x2e0] sm:$0xff]
        %v716 = vld [vmem:[#allocation2 + $0x2e8] sm:$0xff]
        %v717 = vld [vmem:[#allocation2 + $0x2f0] sm:$0xff]
        %v718 = vld [vmem:[#allocation2 + $0x2f8] sm:$0xff]
        %v719 = vld [vmem:[#allocation2 + $0x300] sm:$0xff]
        %v720 = vld [vmem:[#allocation2 + $0x308] sm:$0xff]
        %v721 = vld [vmem:[#allocation2 + $0x310] sm:$0xff]
        %v722 = vld [vmem:[#allocation2 + $0x318] sm:$0xff]
        %v723 = vld [vmem:[#allocation2 + $0x320] sm:$0xff]
        %v724 = vld [vmem:[#allocation2 + $0x328] sm:$0xff]
        %v725 = vld [vmem:[#allocation2 + $0x330] sm:$0xff]
        %v726 = vld [vmem:[#allocation2 + $0x338] sm:$0xff]
        %v727 = vld [vmem:[#allocation2 + $0x340] sm:$0xff]
        %v728 = vld [vmem:[#allocation2 + $0x348] sm:$0xff]
        %v729 = vld [vmem:[#allocation2 + $0x350] sm:$0xff]
        %v730 = vld [vmem:[#allocation2 + $0x358] sm:$0xff]
        %v731 = vld [vmem:[#allocation2 + $0x360] sm:$0xff]
        %v732 = vld [vmem:[#allocation2 + $0x368] sm:$0xff]
        %v733 = vld [vmem:[#allocation2 + $0x370] sm:$0xff]
        %v734 = vld [vmem:[#allocation2 + $0x378] sm:$0xff]
        %v735 = vld [vmem:[#allocation2 + $0x380] sm:$0xff]
        %v736 = vld [vmem:[#allocation2 + $0x388] sm:$0xff]
        %v737 = vld [vmem:[#allocation2 + $0x390] sm:$0xff]
        %v738 = vld [vmem:[#allocation2 + $0x398] sm:$0xff]
        %v739 = vld [vmem:[#allocation2 + $0x3a0] sm:$0xff]
        %v740 = vld [vmem:[#allocation2 + $0x3a8] sm:$0xff]
        %v741 = vld [vmem:[#allocation2 + $0x3b0] sm:$0xff]
        %v742 = vld [vmem:[#allocation2 + $0x3b8] sm:$0xff]
        %v743 = vld [vmem:[#allocation2 + $0x3c0] sm:$0xff]
        %v744 = vld [vmem:[#allocation2 + $0x3c8] sm:$0xff]
        %v745 = vld [vmem:[#allocation2 + $0x3d0] sm:$0xff]
        %v746 = vld [vmem:[#allocation2 + $0x3d8] sm:$0xff]
        %v747 = vld [vmem:[#allocation2 + $0x3e0] sm:$0xff]
        %v748 = vld [vmem:[#allocation2 + $0x3e8] sm:$0xff]
        %v749 = vld [vmem:[#allocation2 + $0x3f0] sm:$0xff]
        %v750 = vld [vmem:[#allocation2 + $0x3f8] sm:$0xff]
        %751 = vmatprep.subr.mxu0 %v654
        %752 = vmatpush1.msra.mxu0 %v653
        %753 = vmatprep.subr.mxu0 %v652
        %754 = vmatpush1.msra.mxu0 %v651
        %755 = vmatprep.subr.mxu0 %v650
        %756 = vmatpush1.msra.mxu0 %v649
        %757 = vmatprep.subr.mxu0 %v648
        %758 = vmatpush1.msra.mxu0 %v647
        %759 = vmatprep.subr.mxu0 %v646
        %760 = vmatpush1.msra.mxu0 %v645
        %761 = vmatprep.subr.mxu0 %v644
        %762 = vmatpush1.msra.mxu0 %v643
        %763 = vmatprep.subr.mxu0 %v642
        %764 = vmatpush1.msra.mxu0 %v641
        %765 = vmatprep.subr.mxu0 %v640
        %766 = vmatpush1.msra.mxu0 %v639
        %767 = vmatprep.subr.mxu0 %v638
        %768 = vmatpush1.msra.mxu0 %v637
        %769 = vmatprep.subr.mxu0 %v636
        %770 = vmatpush1.msra.mxu0 %v635
        %771 = vmatprep.subr.mxu0 %v634
        %772 = vmatpush1.msra.mxu0 %v633
        %773 = vmatprep.subr.mxu0 %v632
        %774 = vmatpush1.msra.mxu0 %v631
        %775 = vmatprep.subr.mxu0 %v630
        %776 = vmatpush1.msra.mxu0 %v629
        %777 = vmatprep.subr.mxu0 %v628
        %778 = vmatpush1.msra.mxu0 %v627
        %779 = vmatprep.subr.mxu0 %v626
        %780 = vmatpush1.msra.mxu0 %v625
        %781 = vmatprep.subr.mxu0 %v624
        %782 = vmatpush1.msra.mxu0 %v623
        %783 = vmatprep.subr.mxu0 %v686
        %784 = vmatpush2.msra.mxu0 %v685
        %785 = vmatprep.subr.mxu0 %v684
        %786 = vmatpush2.msra.mxu0 %v683
        %787 = vmatprep.subr.mxu0 %v682
        %788 = vmatpush2.msra.mxu0 %v681
        %789 = vmatprep.subr.mxu0 %v680
        %790 = vmatpush2.msra.mxu0 %v679
        %791 = vmatprep.subr.mxu0 %v678
        %792 = vmatpush2.msra.mxu0 %v677
        %793 = vmatprep.subr.mxu0 %v676
        %794 = vmatpush2.msra.mxu0 %v675
        %795 = vmatprep.subr.mxu0 %v674
        %796 = vmatpush2.msra.mxu0 %v673
        %797 = vmatprep.subr.mxu0 %v672
        %798 = vmatpush2.msra.mxu0 %v671
        %799 = vmatprep.subr.mxu0 %v670
        %800 = vmatpush2.msra.mxu0 %v669
        %801 = vmatprep.subr.mxu0 %v668
        %802 = vmatpush2.msra.mxu0 %v667
        %803 = vmatprep.subr.mxu0 %v666
        %804 = vmatpush2.msra.mxu0 %v665
        %805 = vmatprep.subr.mxu0 %v664
        %806 = vmatpush2.msra.mxu0 %v663
        %807 = vmatprep.subr.mxu0 %v662
        %808 = vmatpush2.msra.mxu0 %v661
        %809 = vmatprep.subr.mxu0 %v660
        %810 = vmatpush2.msra.mxu0 %v659
        %811 = vmatprep.subr.mxu0 %v658
        %812 = vmatpush2.msra.mxu0 %v657
        %813 = vmatprep.subr.mxu0 %v656
        %814 = vmatpush2.msra.mxu0 %v655
        %815 = vmatprep.mubr.f32.mxu0 %v266
        %816 = vmatmul.mubr.f32.gmra.mxu0 %v265
        %v817 = vpop.f32.mrf.mxu0
        %v818 = vadd.f32 0.0, %v817
        %v819 = vpop.f32.mrf.mxu0
        %v820 = vadd.f32 0.0, %v819
        %821 = vdwg.mxu0
        %822 = vmatprep.subr.mxu0 %v718
        %823 = vmatpush1.msra.mxu0 %v717
        %824 = vmatprep.subr.mxu0 %v716
        %825 = vmatpush1.msra.mxu0 %v715
        %826 = vmatprep.subr.mxu0 %v714
        %827 = vmatpush1.msra.mxu0 %v713
        %828 = vmatprep.subr.mxu0 %v712
        %829 = vmatpush1.msra.mxu0 %v711
        %830 = vmatprep.subr.mxu0 %v710
        %831 = vmatpush1.msra.mxu0 %v709
        %832 = vmatprep.subr.mxu0 %v708
        %833 = vmatpush1.msra.mxu0 %v707
        %834 = vmatprep.subr.mxu0 %v706
        %835 = vmatpush1.msra.mxu0 %v705
        %836 = vmatprep.subr.mxu0 %v704
        %837 = vmatpush1.msra.mxu0 %v703
        %838 = vmatprep.subr.mxu0 %v702
        %839 = vmatpush1.msra.mxu0 %v701
        %840 = vmatprep.subr.mxu0 %v700
        %841 = vmatpush1.msra.mxu0 %v699
        %842 = vmatprep.subr.mxu0 %v698
        %843 = vmatpush1.msra.mxu0 %v697
        %844 = vmatprep.subr.mxu0 %v696
        %845 = vmatpush1.msra.mxu0 %v695
        %846 = vmatprep.subr.mxu0 %v694
        %847 = vmatpush1.msra.mxu0 %v693
        %848 = vmatprep.subr.mxu0 %v692
        %849 = vmatpush1.msra.mxu0 %v691
        %850 = vmatprep.subr.mxu0 %v690
        %851 = vmatpush1.msra.mxu0 %v689
        %852 = vmatprep.subr.mxu0 %v688
        %853 = vmatpush1.msra.mxu0 %v687
        %854 = vmatprep.subr.mxu0 %v750
        %855 = vmatpush2.msra.mxu0 %v749
        %856 = vmatprep.subr.mxu0 %v748
        %857 = vmatpush2.msra.mxu0 %v747
        %858 = vmatprep.subr.mxu0 %v746
        %859 = vmatpush2.msra.mxu0 %v745
        %860 = vmatprep.subr.mxu0 %v744
        %861 = vmatpush2.msra.mxu0 %v743
        %862 = vmatprep.subr.mxu0 %v742
        %863 = vmatpush2.msra.mxu0 %v741
        %864 = vmatprep.subr.mxu0 %v740
        %865 = vmatpush2.msra.mxu0 %v739
        %866 = vmatprep.subr.mxu0 %v738
        %867 = vmatpush2.msra.mxu0 %v737
        %868 = vmatprep.subr.mxu0 %v736
        %869 = vmatpush2.msra.mxu0 %v735
        %870 = vmatprep.subr.mxu0 %v734
        %871 = vmatpush2.msra.mxu0 %v733
        %872 = vmatprep.subr.mxu0 %v732
        %873 = vmatpush2.msra.mxu0 %v731
        %874 = vmatprep.subr.mxu0 %v730
        %875 = vmatpush2.msra.mxu0 %v729
        %876 = vmatprep.subr.mxu0 %v728
        %877 = vmatpush2.msra.mxu0 %v727
        %878 = vmatprep.subr.mxu0 %v726
        %879 = vmatpush2.msra.mxu0 %v725
        %880 = vmatprep.subr.mxu0 %v724
        %881 = vmatpush2.msra.mxu0 %v723
        %882 = vmatprep.subr.mxu0 %v722
        %883 = vmatpush2.msra.mxu0 %v721
        %884 = vmatprep.subr.mxu0 %v720
        %885 = vmatpush2.msra.mxu0 %v719
        %886 = vmatprep.mubr.f32.mxu0 %v268
        %887 = vmatmul.mubr.f32.gmra.mxu0 %v267
        %v888 = vpop.f32.mrf.mxu0
        %v889 = vadd.f32 %v818, %v888
        %v890 = vpop.f32.mrf.mxu0
        %v891 = vadd.f32 %v820, %v890
        %892 = vdwg.mxu0
        %v893 = vld [vmem:[%s3] sm:$0xff]
        %v895 = vcombine.high %v893, %v893
        %vm896 = vcmask 31744
        %v898 = vsel %vm896, %v473, 0
        %vm900 = vcmask 1043456
        %v901 = vsel %vm900, %v893, 0
        %v903 = vsel %vm900, %v895, 0
        %905 = vmatprep.subr.mxu0 0.0
        %906 = vmatpush1.msra.mxu0 0.0
        %907 = vmatprep.subr.mxu0 0.0
        %908 = vmatpush1.msra.mxu0 0.0
        %909 = vmatprep.subr.mxu0 0.0
        %910 = vmatpush1.msra.mxu0 0.0
        %911 = vmatprep.subr.mxu0 0.0
        %912 = vmatpush1.msra.mxu0 0.0
        %913 = vmatprep.subr.mxu0 0.0
        %914 = vmatpush1.msra.mxu0 0.0
        %915 = vmatprep.subr.mxu0 0.0
        %916 = vmatpush1.msra.mxu0 0.0
        %917 = vmatprep.subr.mxu0 0.0
        %918 = vmatpush1.msra.mxu0 0.0
        %919 = vmatprep.subr.mxu0 0.0
        %920 = vmatpush1.msra.mxu0 0.0
        %921 = vmatprep.subr.mxu0 0.0
        %922 = vmatpush1.msra.mxu0 0.0
        %923 = vmatprep.subr.mxu0 0.0
        %924 = vmatpush1.msra.mxu0 0.0
        %925 = vmatprep.subr.mxu0 0.0
        %926 = vmatpush1.msra.mxu0 0.0
        %927 = vmatprep.subr.mxu0 0.0
        %928 = vmatpush1.msra.mxu0 0.0
        %929 = vmatprep.subr.mxu0 0.0
        %930 = vmatpush1.msra.mxu0 0.0
        %931 = vmatprep.subr.mxu0 0.0
        %932 = vmatpush1.msra.mxu0 0.0
        %933 = vmatprep.subr.mxu0 0.0
        %934 = vmatpush1.msra.mxu0 0.0
        %935 = vmatprep.subr.mxu0 %v903
        %936 = vmatpush1.msra.mxu0 %v901
        %937 = vmatprep.subr.mxu0 0.0
        %938 = vmatpush2.msra.mxu0 0.0
        %939 = vmatprep.subr.mxu0 0.0
        %940 = vmatpush2.msra.mxu0 0.0
        %941 = vmatprep.subr.mxu0 0.0
        %942 = vmatpush2.msra.mxu0 0.0
        %943 = vmatprep.subr.mxu0 0.0
        %944 = vmatpush2.msra.mxu0 0.0
        %945 = vmatprep.subr.mxu0 0.0
        %946 = vmatpush2.msra.mxu0 0.0
        %947 = vmatprep.subr.mxu0 0.0
        %948 = vmatpush2.msra.mxu0 0.0
        %949 = vmatprep.subr.mxu0 0.0
        %950 = vmatpush2.msra.mxu0 0.0
        %951 = vmatprep.subr.mxu0 0.0
        %952 = vmatpush2.msra.mxu0 0.0
        %953 = vmatprep.subr.mxu0 0.0
        %954 = vmatpush2.msra.mxu0 0.0
        %955 = vmatprep.subr.mxu0 0.0
        %956 = vmatpush2.msra.mxu0 0.0
        %957 = vmatprep.subr.mxu0 0.0
        %958 = vmatpush2.msra.mxu0 0.0
        %959 = vmatprep.subr.mxu0 0.0
        %960 = vmatpush2.msra.mxu0 0.0
        %961 = vmatprep.subr.mxu0 0.0
        %962 = vmatpush2.msra.mxu0 0.0
        %963 = vmatprep.subr.mxu0 0.0
        %964 = vmatpush2.msra.mxu0 0.0
        %965 = vmatprep.subr.mxu0 0.0
        %966 = vmatpush2.msra.mxu0 0.0
        %967 = vmatprep.subr.mxu0 0.0
        %968 = vmatpush2.msra.mxu0 0.0
        %969 = vmatprep.mubr.f32.mxu0 0.0
        %970 = vmatmul.mubr.f32.gmra.mxu0 %v898
        %v971 = vpop.f32.mrf.mxu0
        %v972 = vadd.f32 0.0, %v971
        %v973 = vpop.f32.mrf.mxu0
        %v974 = vadd.f32 0.0, %v973
        %975 = vdwg.mxu0
        %v976 = vsub.f32 %v889, %v972
        %v977 = vsub.f32 %v891, %v974
        %v978 = vld [vmem:[%s4] sm:$0xff]
        %v980 = vcombine.high %v978, %v978
        %v982 = vsel %vm896, %v622, 0
        %v984 = vsel %vm900, %v978, 0
        %v986 = vsel %vm900, %v980, 0
        %988 = vmatprep.subr.mxu0 0.0
        %989 = vmatpush1.msra.mxu0 0.0
        %990 = vmatprep.subr.mxu0 0.0
        %991 = vmatpush1.msra.mxu0 0.0
        %992 = vmatprep.subr.mxu0 0.0
        %993 = vmatpush1.msra.mxu0 0.0
        %994 = vmatprep.subr.mxu0 0.0
        %995 = vmatpush1.msra.mxu0 0.0
        %996 = vmatprep.subr.mxu0 0.0
        %997 = vmatpush1.msra.mxu0 0.0
        %998 = vmatprep.subr.mxu0 0.0
        %999 = vmatpush1.msra.mxu0 0.0
        %1000 = vmatprep.subr.mxu0 0.0
        %1001 = vmatpush1.msra.mxu0 0.0
        %1002 = vmatprep.subr.mxu0 0.0
        %1003 = vmatpush1.msra.mxu0 0.0
        %1004 = vmatprep.subr.mxu0 0.0
        %1005 = vmatpush1.msra.mxu0 0.0
        %1006 = vmatprep.subr.mxu0 0.0
        %1007 = vmatpush1.msra.mxu0 0.0
        %1008 = vmatprep.subr.mxu0 0.0
        %1009 = vmatpush1.msra.mxu0 0.0
        %1010 = vmatprep.subr.mxu0 0.0
        %1011 = vmatpush1.msra.mxu0 0.0
        %1012 = vmatprep.subr.mxu0 0.0
        %1013 = vmatpush1.msra.mxu0 0.0
        %1014 = vmatprep.subr.mxu0 0.0
        %1015 = vmatpush1.msra.mxu0 0.0
        %1016 = vmatprep.subr.mxu0 0.0
        %1017 = vmatpush1.msra.mxu0 0.0
        %1018 = vmatprep.subr.mxu0 %v986
        %1019 = vmatpush1.msra.mxu0 %v984
        %1020 = vmatprep.subr.mxu0 0.0
        %1021 = vmatpush2.msra.mxu0 0.0
        %1022 = vmatprep.subr.mxu0 0.0
        %1023 = vmatpush2.msra.mxu0 0.0
        %1024 = vmatprep.subr.mxu0 0.0
        %1025 = vmatpush2.msra.mxu0 0.0
        %1026 = vmatprep.subr.mxu0 0.0
        %1027 = vmatpush2.msra.mxu0 0.0
        %1028 = vmatprep.subr.mxu0 0.0
        %1029 = vmatpush2.msra.mxu0 0.0
        %1030 = vmatprep.subr.mxu0 0.0
        %1031 = vmatpush2.msra.mxu0 0.0
        %1032 = vmatprep.subr.mxu0 0.0
        %1033 = vmatpush2.msra.mxu0 0.0
        %1034 = vmatprep.subr.mxu0 0.0
        %1035 = vmatpush2.msra.mxu0 0.0
        %1036 = vmatprep.subr.mxu0 0.0
        %1037 = vmatpush2.msra.mxu0 0.0
        %1038 = vmatprep.subr.mxu0 0.0
        %1039 = vmatpush2.msra.mxu0 0.0
        %1040 = vmatprep.subr.mxu0 0.0
        %1041 = vmatpush2.msra.mxu0 0.0
        %1042 = vmatprep.subr.mxu0 0.0
        %1043 = vmatpush2.msra.mxu0 0.0
        %1044 = vmatprep.subr.mxu0 0.0
        %1045 = vmatpush2.msra.mxu0 0.0
        %1046 = vmatprep.subr.mxu0 0.0
        %1047 = vmatpush2.msra.mxu0 0.0
        %1048 = vmatprep.subr.mxu0 0.0
        %1049 = vmatpush2.msra.mxu0 0.0
        %1050 = vmatprep.subr.mxu0 0.0
        %1051 = vmatpush2.msra.mxu0 0.0
        %1052 = vmatprep.mubr.f32.mxu0 0.0
        %1053 = vmatmul.mubr.f32.gmra.mxu0 %v982
        %v1054 = vpop.f32.mrf.mxu0
        %v1055 = vadd.f32 0.0, %v1054
        %v1056 = vpop.f32.mrf.mxu0
        %v1057 = vadd.f32 0.0, %v1056
        %1058 = vdwg.mxu0
        %v1059 = vmul.f32 %v1055, %v976
        %v1060 = vmul.f32 %v1057, %v977
        %v1061 = vld [vmem:[%s5] sm:$0x3]
        %v1063 = vlaneseq
        %v1064 = vshrl.u32 %v1063, 7
        %v1065 = vsub.s32 0, %v1064
        %v1066 = vrot.slane %v1061, %v1065
        %v1067 = vlaneseq
        %v1068 = vshrl.u32 %v1067, 7
        %v1069 = vsub.s32 1, %v1068
        %v1070 = vrot.slane %v1061, %v1069
        %v1073 = vadd.f32 %v1059, %v1066
        %v1074 = vadd.f32 %v1060, %v1070
        %1075 = vst [vmem:[%s259] sm:$0xff] %v1073
        %1076 = vst [vmem:[%s259 + $0x8] sm:$0xff] %v1074
        %s1077 = sand.u32 %s160, 1
        %s1078 = scalar_lea.sflag [#allocation4], %s1077
        %s1079 = sand.u32 %s160, 1
        %s1080 = smul.addr %s1079, 16
        %s1081 = scalar_lea.vmem [#allocation5], %s1080
        // Predicated region
        $region49: #{tpu_custom_call.1} parent=43 // pred_check
          %p1082 = pneg %p170
        $region50: #{tpu_custom_call.1} parent=43 // pred_check_branch
          %1084 = sbr.rel (%p1082) target = $region52
        $region51: #{tpu_custom_call.1} parent=43 // pred_region
          %s1086 = ssub.s32 256, 256
          %1087 = vsyncadd %s1078, %s1086
          %s1088 = smul.addr %s21, 2
          %s1089 = smul.addr %s1088, 128
          %s1090 = scalar_lea.hbm %s6, %s1089
          %s1092 = sshll.u32 %s1081, 4
          %s1093 = int_to_ptr.vmem [resolvable:$true] %s1092
          %1095 = dma.vmem_to_hbm [thread:$0]  %s1093, 256, %s1090, %s1078
        $region52: #{tpu_custom_call.1} parent=43 // pred_fallthru
          _
      $region44: #{tpu_custom_call.1} parent=5 // pred_fallthru
        _
      %p1096 = scmp.le.s32.totalorder 2, %s16
      // Predicated region
      $region53: #{tpu_custom_call.1} parent=5 // pred_check
        %p1097 = pneg %p1096
      $region54: #{tpu_custom_call.1} parent=5 // pred_check_branch
        %1099 = sbr.rel (%p1097) target = $region56
      $region55: #{tpu_custom_call.1} parent=5 // pred_region
        %s1100 = ssub.s32 %s16, 2
        // Predicated region
        $region57: #{tpu_custom_call.1} parent=55 // pred_check
          %p1101 = pneg %p176
        $region58: #{tpu_custom_call.1} parent=55 // pred_check_branch
          %1103 = sbr.rel (%p1101) target = $region60
        $region59: #{tpu_custom_call.1} parent=55 // pred_region
          %s1104 = sand.u32 %s161, 1
          %s1105 = scalar_lea.sflag [#allocation4], %s1104
          %s1106 = sand.u32 %s161, 1
          %s1107 = smul.addr %s1106, 16
          %s1108 = scalar_lea.vmem [#allocation5], %s1107
          %1109 = dma.done %s1105, 256
        $region60: #{tpu_custom_call.1} parent=55 // pred_fallthru
          _
      $region56: #{tpu_custom_call.1} parent=5 // pred_fallthru
        _
    $region6: #{tpu_custom_call.1} parent=1 // loop_footer
      %s20 = sadd.s32 1, %s16
    $region7: #{tpu_custom_call.1} parent=1 // loop_footer_branch
      %15 = sbr.rel target = $region3
    $region8: #{tpu_custom_call.1} parent=1 // loop_exit
      _
    %1110 = vsyncpa [#allocation3], 1
    %s1111 = scalar_lea.sflag [#allocation3], 1
    %1112 = vsyncpa %s1111, 1
    %1113 = vsyncpa [#allocation4], 1
    %s1114 = scalar_lea.sflag [#allocation4], 1
    %1115 = vsyncpa %s1114, 1

</llo_original>
